<compile_context>
chip_gen: v5e
topology: v5e:2x2
jax: 0.10.0
libtpu: 0.0.40
codegen_flags: <defaults>
</compile_context>

<pallas_src>
import math
import jax
import jax.numpy as jnp
from jax.experimental import pallas as pl
from jax.experimental.pallas import tpu as pltpu

_SUBLANE = 8  # f32 sublane multiple (second-to-last block dim)


def _round_up(x, m):
    return ((x + m - 1) // m) * m


def _alignment_kernel(x_ref, w1_ref, b1_ref, w2_ref, b2_ref, o_ref):
    # Fused hot path: cast-in-kernel, two MXU matmuls with f32 accumulation,
    # VPU bias-add / ReLU epilogues in f32.
    x = x_ref[...].astype(w1_ref.dtype)
    h = jnp.dot(x, w1_ref[...], preferred_element_type=jnp.float32)
    h = jnp.maximum(h + b1_ref[...], 0.0)                     # bias + ReLU (f32)
    o = jnp.dot(h.astype(w2_ref.dtype), w2_ref[...],
                preferred_element_type=jnp.float32)
    o_ref[...] = (o + b2_ref[...]).astype(o_ref.dtype)


def prepare_params(w1, b1, w2, b2, *, compute_dtype=jnp.bfloat16):
    """One-time param prep: cast weights to the MXU compute dtype, biases to f32.

    Call this once at init; pass the result to alignment_network on every call
    so no per-call cast / pad passes run in the wrapper.
    """
    return (w1.astype(compute_dtype),
            b1.reshape(1, -1).astype(jnp.float32),
            w2.astype(compute_dtype),
            b2.reshape(1, -1).astype(jnp.float32))


def alignment_network(x, w1, b1, w2, b2, *, tile_m=None):
    """Fused MLP: relu(x @ w1 + b1) @ w2 + b2.

    x  : [M, D_in] (any float dtype; cast to w1.dtype inside the kernel)
    w1 : [D_in, D_h]   b1 : [1, D_h] or [D_h]
    w2 : [D_h, D_h]    b2 : [1, D_h] or [D_h]        ->  [M, D_h] (x.dtype)
    Weights should already be in the desired compute dtype (see prepare_params).
    """
    M, D_in = x.shape
    D_h = w1.shape[1]
    out_dtype = x.dtype

    b1 = b1.reshape(1, -1)
    b2 = b2.reshape(1, -1)

    # --- batch tile heuristic --------------------------------------------------
    # Keep >=2 grid steps (feeds both v7x TensorCores via the "parallel" axis)
    # while letting each step carry enough bytes to amortize per-step overhead.
    if tile_m is None:
        tile_m = min(_round_up(pl.cdiv(M, 2), _SUBLANE), 512)
    tile_m = max(_SUBLANE, _round_up(min(tile_m, _round_up(M, _SUBLANE)), _SUBLANE))

    grid = (pl.cdiv(M, tile_m),)  # partial trailing block handled by Pallas masking

    # Advisory cost estimate from the TRUE (unpadded) dims.
    w_bytes = jnp.dtype(w1.dtype).itemsize
    x_bytes = jnp.dtype(x.dtype).itemsize
    o_bytes = jnp.dtype(out_dtype).itemsize
    cost = pl.CostEstimate(
        flops=2 * M * D_in * D_h + 2 * M * D_h * D_h,
        transcendentals=0,
        bytes_accessed=(M * D_in * x_bytes                 # x
                        + D_in * D_h * w_bytes             # w1
                        + D_h * D_h * w_bytes              # w2
                        + 2 * D_h * 4                      # biases (f32)
                        + M * D_h * o_bytes))              # out

    # Weights/biases have a constant index_map (fetched once, resident).
    resident = dict(pipeline_mode=pl.Buffered(1))

    out = pl.pallas_call(
        _alignment_kernel,
        out_shape=jax.ShapeDtypeStruct((M, D_h), out_dtype),
        grid_spec=pltpu.PrefetchScalarGridSpec(
            num_scalar_prefetch=0,
            grid=grid,
            in_specs=[
                pl.BlockSpec((tile_m, D_in), lambda i: (i, 0)),            # x tile (streamed)
                pl.BlockSpec((D_in, D_h), lambda i: (0, 0), **resident),   # w1 (resident)
                pl.BlockSpec((1, D_h), lambda i: (0, 0), **resident),      # b1
                pl.BlockSpec((D_h, D_h), lambda i: (0, 0), **resident),    # w2 (resident)
                pl.BlockSpec((1, D_h), lambda i: (0, 0), **resident),      # b2
            ],
            out_specs=pl.BlockSpec((tile_m, D_h), lambda i: (i, 0)),
        ),
        compiler_params=pltpu.CompilerParams(
            dimension_semantics=("parallel",)),
        cost_estimate=cost,
    )(x, w1, b1, w2, b2)

    return out


def init_params(key, input_dim, output_dim, dtype=jnp.float32):
    """Deterministic init matching nn.Linear's default U(-1/sqrt(fan_in), 1/sqrt(fan_in))."""
    k1, k2, k3, k4 = jax.random.split(key, 4)
    bound1 = 1.0 / math.sqrt(input_dim)
    bound2 = 1.0 / math.sqrt(output_dim)
    w1 = jax.random.uniform(k1, (input_dim, output_dim), dtype, -bound1, bound1)
    b1 = jax.random.uniform(k2, (1, output_dim), dtype, -bound1, bound1)
    w2 = jax.random.uniform(k3, (output_dim, output_dim), dtype, -bound2, bound2)
    b2 = jax.random.uniform(k4, (1, output_dim), dtype, -bound2, bound2)
    return w1, b1, w2, b2


if __name__ == "__main__":
    key = jax.random.PRNGKey(0)
    kx, kp = jax.random.split(key)

    # Small feature dims (as the module implies); batch chosen so the grid has
    # 2 steps (exercises pipelining and the v7x two-core parallel axis).
    batch, input_dim, output_dim = 512, 32, 64
    x = jax.random.normal(kx, (batch, input_dim), jnp.float32)
    w1, b1, w2, b2 = init_params(kp, input_dim, output_dim)

    # Pure-JAX reference of the fused forward pass.
    ref = jnp.maximum(x @ w1 + b1, 0.0) @ w2 + b2

    # f32 MXU path: tight tolerance against the reference.
    p32 = prepare_params(w1, b1, w2, b2, compute_dtype=jnp.float32)
    out_f32 = alignment_network(x, *p32)
    jax.block_until_ready(out_f32)
    assert out_f32.shape == (batch, output_dim)
    assert jnp.allclose(out_f32, ref, atol=1e-5, rtol=1e-5)

    # bf16 MXU path (fast default): looser tolerance for bf16 operand rounding.
    pbf = prepare_params(w1, b1, w2, b2, compute_dtype=jnp.bfloat16)
    out_bf16 = alignment_network(x, *pbf)
    jax.block_until_ready(out_bf16)
    assert out_bf16.shape == (batch, output_dim)
    assert jnp.allclose(out_bf16, ref, atol=5e-2, rtol=5e-2)

    # Non-multiple-of-tile batch (partial trailing block) sanity check.
    x_odd = x[:137]
    out_odd = alignment_network(x_odd, *p32)
    jax.block_until_ready(out_odd)
    assert out_odd.shape == (137, output_dim)
    assert jnp.allclose(out_odd, ref[:137], atol=1e-5, rtol=1e-5)

    print("KERNEL_OK")
</pallas_src>

<mosaic_0001>
module attributes {stable_mosaic.version = 11 : i64} {
  func.func @_alignment_kernel(%arg0: i32, %arg1: memref<256x32xf32, #tpu.memory_space<vmem>>, %arg2: memref<32x64xf32, #tpu.memory_space<vmem>>, %arg3: memref<1x64xf32, #tpu.memory_space<vmem>>, %arg4: memref<64x64xf32, #tpu.memory_space<vmem>>, %arg5: memref<1x64xf32, #tpu.memory_space<vmem>>, %arg6: memref<256x64xf32, #tpu.memory_space<vmem>>) attributes {dimension_semantics = [#tpu.dimension_semantics<parallel>], iteration_bounds = array<i64: 2>, scalar_prefetch = 0 : i64, scratch_operands = 0 : i64, tpu.core_type = #tpu.core_type<tc>, window_params = [{transform_indices = @transform_0, window_bounds = array<i64: 256, 32>}, {pipeline_mode = #tpu.pipeline_mode<synchronous>, transform_indices = @transform_1, window_bounds = array<i64: 32, 64>}, {pipeline_mode = #tpu.pipeline_mode<synchronous>, transform_indices = @transform_2, window_bounds = array<i64: 1, 64>}, {pipeline_mode = #tpu.pipeline_mode<synchronous>, transform_indices = @transform_3, window_bounds = array<i64: 64, 64>}, {pipeline_mode = #tpu.pipeline_mode<synchronous>, transform_indices = @transform_4, window_bounds = array<i64: 1, 64>}, {transform_indices = @transform_5, window_bounds = array<i64: 256, 64>}]} {
    %c0 = arith.constant 0 : index
    %c0_0 = arith.constant 0 : index
    %0 = vector.load %arg1[%c0, %c0_0] : memref<256x32xf32, #tpu.memory_space<vmem>>, vector<256x32xf32>
    %c0_1 = arith.constant 0 : index
    %c0_2 = arith.constant 0 : index
    %1 = vector.load %arg2[%c0_1, %c0_2] : memref<32x64xf32, #tpu.memory_space<vmem>>, vector<32x64xf32>
    %cst = arith.constant dense<0.000000e+00> : vector<256x64xf32>
    %2 = tpu.matmul %0, %1, %cst {dimension_numbers = #tpu.dot_dimension_numbers<[1], [0], [0], [1], [0, 0, 1, 1], [], []>} : vector<256x32xf32>, vector<32x64xf32>, vector<256x64xf32> -> vector<256x64xf32>
    %c0_3 = arith.constant 0 : index
    %c0_4 = arith.constant 0 : index
    %3 = vector.load %arg3[%c0_3, %c0_4] : memref<1x64xf32, #tpu.memory_space<vmem>>, vector<1x64xf32>
    %4 = vector.broadcast %3 : vector<1x64xf32> to vector<256x64xf32>
    %5 = arith.addf %2, %4 : vector<256x64xf32>
    %cst_5 = arith.constant 0.000000e+00 : f32
    %6 = vector.broadcast %cst_5 : f32 to vector<256x64xf32>
    %7 = arith.maximumf %5, %6 : vector<256x64xf32>
    %c0_6 = arith.constant 0 : index
    %c0_7 = arith.constant 0 : index
    %8 = vector.load %arg4[%c0_6, %c0_7] : memref<64x64xf32, #tpu.memory_space<vmem>>, vector<64x64xf32>
    %cst_8 = arith.constant dense<0.000000e+00> : vector<256x64xf32>
    %9 = tpu.matmul %7, %8, %cst_8 {dimension_numbers = #tpu.dot_dimension_numbers<[1], [0], [0], [1], [0, 0, 1, 1], [], []>} : vector<256x64xf32>, vector<64x64xf32>, vector<256x64xf32> -> vector<256x64xf32>
    %c0_9 = arith.constant 0 : index
    %c0_10 = arith.constant 0 : index
    %10 = vector.load %arg5[%c0_9, %c0_10] : memref<1x64xf32, #tpu.memory_space<vmem>>, vector<1x64xf32>
    %11 = vector.broadcast %10 : vector<1x64xf32> to vector<256x64xf32>
    %12 = arith.addf %9, %11 : vector<256x64xf32>
    %c0_11 = arith.constant 0 : index
    %c0_12 = arith.constant 0 : index
    %13 = vector.load %arg6[%c0_11, %c0_12] : memref<256x64xf32, #tpu.memory_space<vmem>>, vector<256x64xf32>
    tpu.vector_store %arg6[%c0_11, %c0_12], %12 {strides = array<i32>} : memref<256x64xf32, #tpu.memory_space<vmem>>, vector<256x64xf32>,
    return
  }
  func.func @transform_0(%arg0: i32) -> (i32, i32) {
    %c0_i32 = arith.constant 0 : i32
    %c0_i32_0 = arith.constant 0 : i32
    return %arg0, %c0_i32 : i32, i32
  }
  func.func @transform_1(%arg0: i32) -> (i32, i32) {
    %c0_i32 = arith.constant 0 : i32
    %c0_i32_0 = arith.constant 0 : i32
    %c0_i32_1 = arith.constant 0 : i32
    return %c0_i32, %c0_i32_0 : i32, i32
  }
  func.func @transform_2(%arg0: i32) -> (i32, i32) {
    %c0_i32 = arith.constant 0 : i32
    %c0_i32_0 = arith.constant 0 : i32
    %c0_i32_1 = arith.constant 0 : i32
    return %c0_i32, %c0_i32_0 : i32, i32
  }
  func.func @transform_3(%arg0: i32) -> (i32, i32) {
    %c0_i32 = arith.constant 0 : i32
    %c0_i32_0 = arith.constant 0 : i32
    %c0_i32_1 = arith.constant 0 : i32
    return %c0_i32, %c0_i32_0 : i32, i32
  }
  func.func @transform_4(%arg0: i32) -> (i32, i32) {
    %c0_i32 = arith.constant 0 : i32
    %c0_i32_0 = arith.constant 0 : i32
    %c0_i32_1 = arith.constant 0 : i32
    return %c0_i32, %c0_i32_0 : i32, i32
  }
  func.func @transform_5(%arg0: i32) -> (i32, i32) {
    %c0_i32 = arith.constant 0 : i32
    %c0_i32_0 = arith.constant 0 : i32
    return %arg0, %c0_i32 : i32, i32
  }
}

</mosaic_0001>

<llo_original>
// kernel: tpu_custom_call.1
$region0: #{tpu_custom_call.1}
  #allocation0 [shape = 'u32[]', space=smem, size = 0x4, offset = 0x4, fixed_abs, tag = 'smem constant byte address 0x4 - core index']
  #allocation1 [shape = 'u32[72,128]{1,0:T(1,128)}', space=vmem, size = 0x9000, scoped, tag = 'internal scratch']
  %s0 = inlined_call_operand.vmem [shape: f32[512,32], index: 0, kind: input, shape index: {}]
  %s1 = inlined_call_operand.vmem [shape: f32[32,64], index: 1, kind: input, shape index: {}]
  %s2 = inlined_call_operand.vmem [shape: f32[1,64], index: 2, kind: input, shape index: {}]
  %s3 = inlined_call_operand.vmem [shape: f32[64,64], index: 3, kind: input, shape index: {}]
  %s4 = inlined_call_operand.vmem [shape: f32[1,64], index: 4, kind: input, shape index: {}]
  %s5 = inlined_call_operand.vmem [shape: f32[512,64], index: 5, kind: output, shape index: {}]
  %s6 = sld [smem:[#allocation0]]
  $region53: #{tpu_custom_call.1} parent=0
    _
  %s8 = ssub.s32 1, %s6
  %s9 = scalar_select 0, %s8, %s6
  loop: start=0, step=1, limit=4
  $region2: #{tpu_custom_call.1} parent=0 // loop_pre_header
    _
  $region3: #{tpu_custom_call.1} parent=0 // loop_header
    %s11 = sphi 0, %s15
    %p12 = scmp.ge.s32.totalorder %s11, 4
    %s21 = sphi 0, %s23
    %s24 = sphi 0, %s21
    %s25 = sphi 0, %s24
    %s41 = sphi 0, %s25
    %s45 = sphi 0, %s45
    %s47 = sphi 0, %s45
    %s48 = sphi 0, %s47
    %s62 = sphi 0, %s48
    %s66 = sphi 0, %s66
    %s68 = sphi 0, %s66
    %s69 = sphi 0, %s68
    %s83 = sphi 0, %s69
    %s87 = sphi 0, %s87
    %s89 = sphi 0, %s87
    %s90 = sphi 0, %s89
    %s104 = sphi 0, %s90
    %s108 = sphi 0, %s108
    %s110 = sphi 0, %s108
    %s111 = sphi 0, %s110
    %s125 = sphi 0, %s111
    %s131 = sphi 0, %s133
    %s134 = sphi 0, %s131
    %s135 = sphi 0, %s134
    %s151 = sphi 0, %s135
  $region4: #{tpu_custom_call.1} parent=0 // loop_header_branch
    %14 = sbr.rel (%p12) target = $region8
  $region5: #{tpu_custom_call.1} parent=0 // loop_body
    %s16 = ssub.s32 %s11, 1
    %s17 = ssub.s32 %s11, 2
    %s18 = sadd.s32 %s11, 1
    %s19 = ssub.s32 %s11, %s18
    %p20 = scmp.eq.s32.totalorder %s19, 0
    %s22 = sadd.s32 %s21, 1
    %s23 = scalar_select %p20, %s21, %s22
    %p26 = pneg %p20
    %p27 = scmp.eq.s32.totalorder %s11, 1
    %p28 = por %p26, %p27
    %p29 = scmp.ne.s32.totalorder %s21, %s24
    %p30 = scmp.eq.s32.totalorder %s11, 0
    %p31 = por %p29, %p30
    %p32 = scmp.ne.s32.totalorder %s21, %s24
    %p33 = scmp.eq.s32.totalorder %s16, 1
    %p34 = por %p32, %p33
    %p35 = scmp.ne.s32.totalorder %s24, %s25
    %p36 = scmp.eq.s32.totalorder %s16, 0
    %p37 = por %p35, %p36
    %p38 = scmp.ne.s32.totalorder %s24, %s25
    %p39 = scmp.eq.s32.totalorder %s17, 1
    %p40 = por %p38, %p39
    %p42 = scmp.ne.s32.totalorder %s25, %s41
    %p43 = scmp.eq.s32.totalorder %s17, 0
    %p44 = por %p42, %p43
    %s46 = sadd.s32 %s45, 1
    %p49 = scmp.eq.s32.totalorder %s11, 1
    %p50 = scmp.ne.s32.totalorder %s45, %s47
    %p51 = scmp.eq.s32.totalorder %s11, 0
    %p52 = por %p50, %p51
    %p53 = scmp.ne.s32.totalorder %s45, %s47
    %p54 = scmp.eq.s32.totalorder %s16, 1
    %p55 = por %p53, %p54
    %p56 = scmp.ne.s32.totalorder %s47, %s48
    %p57 = scmp.eq.s32.totalorder %s16, 0
    %p58 = por %p56, %p57
    %p59 = scmp.ne.s32.totalorder %s47, %s48
    %p60 = scmp.eq.s32.totalorder %s17, 1
    %p61 = por %p59, %p60
    %p63 = scmp.ne.s32.totalorder %s48, %s62
    %p64 = scmp.eq.s32.totalorder %s17, 0
    %p65 = por %p63, %p64
    %s67 = sadd.s32 %s66, 1
    %p70 = scmp.eq.s32.totalorder %s11, 1
    %p71 = scmp.ne.s32.totalorder %s66, %s68
    %p72 = scmp.eq.s32.totalorder %s11, 0
    %p73 = por %p71, %p72
    %p74 = scmp.ne.s32.totalorder %s66, %s68
    %p75 = scmp.eq.s32.totalorder %s16, 1
    %p76 = por %p74, %p75
    %p77 = scmp.ne.s32.totalorder %s68, %s69
    %p78 = scmp.eq.s32.totalorder %s16, 0
    %p79 = por %p77, %p78
    %p80 = scmp.ne.s32.totalorder %s68, %s69
    %p81 = scmp.eq.s32.totalorder %s17, 1
    %p82 = por %p80, %p81
    %p84 = scmp.ne.s32.totalorder %s69, %s83
    %p85 = scmp.eq.s32.totalorder %s17, 0
    %p86 = por %p84, %p85
    %s88 = sadd.s32 %s87, 1
    %p91 = scmp.eq.s32.totalorder %s11, 1
    %p92 = scmp.ne.s32.totalorder %s87, %s89
    %p93 = scmp.eq.s32.totalorder %s11, 0
    %p94 = por %p92, %p93
    %p95 = scmp.ne.s32.totalorder %s87, %s89
    %p96 = scmp.eq.s32.totalorder %s16, 1
    %p97 = por %p95, %p96
    %p98 = scmp.ne.s32.totalorder %s89, %s90
    %p99 = scmp.eq.s32.totalorder %s16, 0
    %p100 = por %p98, %p99
    %p101 = scmp.ne.s32.totalorder %s89, %s90
    %p102 = scmp.eq.s32.totalorder %s17, 1
    %p103 = por %p101, %p102
    %p105 = scmp.ne.s32.totalorder %s90, %s104
    %p106 = scmp.eq.s32.totalorder %s17, 0
    %p107 = por %p105, %p106
    %s109 = sadd.s32 %s108, 1
    %p112 = scmp.eq.s32.totalorder %s11, 1
    %p113 = scmp.ne.s32.totalorder %s108, %s110
    %p114 = scmp.eq.s32.totalorder %s11, 0
    %p115 = por %p113, %p114
    %p116 = scmp.ne.s32.totalorder %s108, %s110
    %p117 = scmp.eq.s32.totalorder %s16, 1
    %p118 = por %p116, %p117
    %p119 = scmp.ne.s32.totalorder %s110, %s111
    %p120 = scmp.eq.s32.totalorder %s16, 0
    %p121 = por %p119, %p120
    %p122 = scmp.ne.s32.totalorder %s110, %s111
    %p123 = scmp.eq.s32.totalorder %s17, 1
    %p124 = por %p122, %p123
    %p126 = scmp.ne.s32.totalorder %s111, %s125
    %p127 = scmp.eq.s32.totalorder %s17, 0
    %p128 = por %p126, %p127
    %s129 = ssub.s32 %s11, %s18
    %p130 = scmp.eq.s32.totalorder %s129, 0
    %s132 = sadd.s32 %s131, 1
    %s133 = scalar_select %p130, %s131, %s132
    %p136 = pneg %p130
    %p137 = scmp.eq.s32.totalorder %s11, 1
    %p138 = por %p136, %p137
    %p139 = scmp.ne.s32.totalorder %s131, %s134
    %p140 = scmp.eq.s32.totalorder %s11, 0
    %p141 = por %p139, %p140
    %p142 = scmp.ne.s32.totalorder %s131, %s134
    %p143 = scmp.eq.s32.totalorder %s16, 1
    %p144 = por %p142, %p143
    %p145 = scmp.ne.s32.totalorder %s134, %s135
    %p146 = scmp.eq.s32.totalorder %s16, 0
    %p147 = por %p145, %p146
    %p148 = scmp.ne.s32.totalorder %s134, %s135
    %p149 = scmp.eq.s32.totalorder %s17, 1
    %p150 = por %p148, %p149
    %p152 = scmp.ne.s32.totalorder %s135, %s151
    %p153 = scmp.eq.s32.totalorder %s17, 0
    %p154 = por %p152, %p153
    %p155 = scmp.le.s32.totalorder 1, %s11
    %p156 = scmp.lt.s32.totalorder %s11, 3
    %p157 = pnand %p155, %p156
    %p158 = pneg %p157
    // Predicated region
    $region9: #{tpu_custom_call.1} parent=5 // pred_check
      _
    $region10: #{tpu_custom_call.1} parent=5 // pred_check_branch
      %160 = sbr.rel (%p157) target = $region12
    $region11: #{tpu_custom_call.1} parent=5 // pred_region
      %s161 = ssub.s32 %s11, 1
      // Predicated region
      $region13: #{tpu_custom_call.1} parent=11 // pred_check
        %p162 = pneg %p58
      $region14: #{tpu_custom_call.1} parent=11 // pred_check_branch
        %164 = sbr.rel (%p162) target = $region16
      $region15: #{tpu_custom_call.1} parent=11 // pred_region
        _
      $region16: #{tpu_custom_call.1} parent=11 // pred_fallthru
        _
      // Predicated region
      $region17: #{tpu_custom_call.1} parent=11 // pred_check
        %p165 = pneg %p79
      $region18: #{tpu_custom_call.1} parent=11 // pred_check_branch
        %167 = sbr.rel (%p165) target = $region20
      $region19: #{tpu_custom_call.1} parent=11 // pred_region
        _
      $region20: #{tpu_custom_call.1} parent=11 // pred_fallthru
        _
      // Predicated region
      $region21: #{tpu_custom_call.1} parent=11 // pred_check
        %p168 = pneg %p100
      $region22: #{tpu_custom_call.1} parent=11 // pred_check_branch
        %170 = sbr.rel (%p168) target = $region24
      $region23: #{tpu_custom_call.1} parent=11 // pred_region
        _
      $region24: #{tpu_custom_call.1} parent=11 // pred_fallthru
        _
      // Predicated region
      $region25: #{tpu_custom_call.1} parent=11 // pred_check
        %p171 = pneg %p121
      $region26: #{tpu_custom_call.1} parent=11 // pred_check_branch
        %173 = sbr.rel (%p171) target = $region28
      $region27: #{tpu_custom_call.1} parent=11 // pred_region
        _
      $region28: #{tpu_custom_call.1} parent=11 // pred_fallthru
        _
    $region12: #{tpu_custom_call.1} parent=5 // pred_fallthru
      _
    %p174 = scmp.lt.s32.totalorder %s11, 2
    // Predicated region
    $region29: #{tpu_custom_call.1} parent=5 // pred_check
      %p175 = pneg %p174
    $region30: #{tpu_custom_call.1} parent=5 // pred_check_branch
      %177 = sbr.rel (%p175) target = $region32
    $region31: #{tpu_custom_call.1} parent=5 // pred_region
      // Predicated region
      $region33: #{tpu_custom_call.1} parent=31 // pred_check
        %p178 = pneg %p31
      $region34: #{tpu_custom_call.1} parent=31 // pred_check_branch
        %180 = sbr.rel (%p178) target = $region36
      $region35: #{tpu_custom_call.1} parent=31 // pred_region
        %s181 = smul.u32 32, %s11
        %p182 = scmp.lt.s32.totalorder %s181, 63
        %s183 = scalar_select %p182, %s181, 63
        %s184 = smul.addr %s183, 8
        %s185 = scalar_lea.vmem %s0, %s184
        %s186 = smul.u32 32, %s11
      $region36: #{tpu_custom_call.1} parent=31 // pred_fallthru
        _
    $region32: #{tpu_custom_call.1} parent=5 // pred_fallthru
      _
    %p187 = scmp.le.s32.totalorder 1, %s11
    %p188 = scmp.lt.s32.totalorder %s11, 3
    %p189 = pnand %p187, %p188
    %p190 = pneg %p189
    // Predicated region
    $region37: #{tpu_custom_call.1} parent=5 // pred_check
      _
    $region38: #{tpu_custom_call.1} parent=5 // pred_check_branch
      %192 = sbr.rel (%p189) target = $region40
    $region39: #{tpu_custom_call.1} parent=5 // pred_region
      %s193 = ssub.s32 %s11, 1
      %s194 = smul.u32 32, %s16
      %p195 = scmp.lt.s32.totalorder %s194, 63
      %s196 = scalar_select %p195, %s194, 63
      %s197 = smul.addr %s196, 8
      %s198 = scalar_lea.vmem %s0, %s197
      %p199 = pneg %p37
      %p200 = pneg %p34
      %p201 = pneg %p58
      %p202 = pneg %p55
      %p203 = pneg %p79
      %p204 = pneg %p76
      %p205 = pneg %p100
      %p206 = pneg %p97
      %p207 = pneg %p121
      %p208 = pneg %p118
      %p209 = pneg %p147
      %p210 = pneg %p144
      %s211 = smul.u32 32, %s16
      %p212 = scmp.lt.s32.totalorder %s211, 63
      %s213 = scalar_select %p212, %s211, 63
      %s214 = smul.addr %s213, 8
      %s215 = scalar_lea.vmem %s5, %s214
      %s216 = smul.u32 32, %s16
      %p217 = scmp.lt.s32.totalorder %s216, 63
      %s218 = scalar_select %p217, %s216, 63
      %s219 = smul.addr %s218, 8
      %s220 = scalar_lea.vmem %s0, %s219
      %s221 = smul.u32 32, %s16
      %s222 = smul.u32 32, %s16
      %p223 = scmp.lt.s32.totalorder %s222, 63
      %s224 = scalar_select %p223, %s222, 63
      %s225 = smul.addr %s224, 8
      %s226 = scalar_lea.vmem %s5, %s225
      %s227 = smul.u32 32, %s16
      %v228 = vld [vmem:[%s220] sm:$0xff]
      %v229 = vld [vmem:[%s220 + $0x8] sm:$0xff]
      %v230 = vld [vmem:[%s220 + $0x10] sm:$0xff]
      %v231 = vld [vmem:[%s220 + $0x18] sm:$0xff]
      %v232 = vld [vmem:[%s220 + $0x20] sm:$0xff]
      %v233 = vld [vmem:[%s220 + $0x28] sm:$0xff]
      %v234 = vld [vmem:[%s220 + $0x30] sm:$0xff]
      %v235 = vld [vmem:[%s220 + $0x38] sm:$0xff]
      %v236 = vld [vmem:[%s220 + $0x40] sm:$0xff]
      %v237 = vld [vmem:[%s220 + $0x48] sm:$0xff]
      %v238 = vld [vmem:[%s220 + $0x50] sm:$0xff]
      %v239 = vld [vmem:[%s220 + $0x58] sm:$0xff]
      %v240 = vld [vmem:[%s220 + $0x60] sm:$0xff]
      %v241 = vld [vmem:[%s220 + $0x68] sm:$0xff]
      %v242 = vld [vmem:[%s220 + $0x70] sm:$0xff]
      %v243 = vld [vmem:[%s220 + $0x78] sm:$0xff]
      %v244 = vld [vmem:[%s220 + $0x80] sm:$0xff]
      %v245 = vld [vmem:[%s220 + $0x88] sm:$0xff]
      %v246 = vld [vmem:[%s220 + $0x90] sm:$0xff]
      %v247 = vld [vmem:[%s220 + $0x98] sm:$0xff]
      %v248 = vld [vmem:[%s220 + $0xa0] sm:$0xff]
      %v249 = vld [vmem:[%s220 + $0xa8] sm:$0xff]
      %v250 = vld [vmem:[%s220 + $0xb0] sm:$0xff]
      %v251 = vld [vmem:[%s220 + $0xb8] sm:$0xff]
      %v252 = vld [vmem:[%s220 + $0xc0] sm:$0xff]
      %v253 = vld [vmem:[%s220 + $0xc8] sm:$0xff]
      %v254 = vld [vmem:[%s220 + $0xd0] sm:$0xff]
      %v255 = vld [vmem:[%s220 + $0xd8] sm:$0xff]
      %v256 = vld [vmem:[%s220 + $0xe0] sm:$0xff]
      %v257 = vld [vmem:[%s220 + $0xe8] sm:$0xff]
      %v258 = vld [vmem:[%s220 + $0xf0] sm:$0xff]
      %v259 = vld [vmem:[%s220 + $0xf8] sm:$0xff]
      %v260 = vld [vmem:[%s1] sm:$0xff]
      %v261 = vld [vmem:[%s1 + $0x8] sm:$0xff]
      %v262 = vld [vmem:[%s1 + $0x10] sm:$0xff]
      %v263 = vld [vmem:[%s1 + $0x18] sm:$0xff]
      %v264 = vld [vmem:[%s2] sm:$0x1]
      %v266 = vperm.slane %v264, 0
      %vm268 = vcmask 261120
      %v270 = vsel %vm268, %v228, 0
      %v273 = vsel %vm268, %v229, 0
      %v276 = vsel %vm268, %v230, 0
      %v279 = vsel %vm268, %v231, 0
      %v282 = vsel %vm268, %v232, 0
      %v285 = vsel %vm268, %v233, 0
      %v288 = vsel %vm268, %v234, 0
      %v291 = vsel %vm268, %v235, 0
      %v294 = vsel %vm268, %v236, 0
      %v297 = vsel %vm268, %v237, 0
      %v300 = vsel %vm268, %v238, 0
      %v303 = vsel %vm268, %v239, 0
      %v306 = vsel %vm268, %v240, 0
      %v309 = vsel %vm268, %v241, 0
      %v312 = vsel %vm268, %v242, 0
      %v315 = vsel %vm268, %v243, 0
      %v318 = vsel %vm268, %v244, 0
      %v321 = vsel %vm268, %v245, 0
      %v324 = vsel %vm268, %v246, 0
      %v327 = vsel %vm268, %v247, 0
      %v330 = vsel %vm268, %v248, 0
      %v333 = vsel %vm268, %v249, 0
      %v336 = vsel %vm268, %v250, 0
      %v339 = vsel %vm268, %v251, 0
      %v342 = vsel %vm268, %v252, 0
      %v345 = vsel %vm268, %v253, 0
      %v348 = vsel %vm268, %v254, 0
      %v351 = vsel %vm268, %v255, 0
      %v354 = vsel %vm268, %v256, 0
      %v357 = vsel %vm268, %v257, 0
      %v360 = vsel %vm268, %v258, 0
      %v363 = vsel %vm268, %v259, 0
      %365 = vmatpush.msra.mxu0 0.0
      %366 = vmatpush.msra.mxu0 0.0
      %367 = vmatpush.msra.mxu0 0.0
      %368 = vmatpush.msra.mxu0 0.0
      %369 = vmatpush.msra.mxu0 0.0
      %370 = vmatpush.msra.mxu0 0.0
      %371 = vmatpush.msra.mxu0 0.0
      %372 = vmatpush.msra.mxu0 0.0
      %373 = vmatpush.msra.mxu0 0.0
      %374 = vmatpush.msra.mxu0 0.0
      %375 = vmatpush.msra.mxu0 0.0
      %376 = vmatpush.msra.mxu0 0.0
      %377 = vmatpush.msra.mxu0 %v263
      %378 = vmatpush.msra.mxu0 %v262
      %379 = vmatpush.msra.mxu0 %v261
      %380 = vmatpush.msra.mxu0 %v260
      %381 = vmatmul.f32.gmra.mxu0 %v270
      %v382 = vpop.f32.mrf.mxu0
      %v383 = vadd.f32 %v266, %v382
      %384 = vmatmul.f32.gmra.mxu0 %v273
      %v385 = vpop.f32.mrf.mxu0
      %v386 = vadd.f32 %v266, %v385
      %387 = vmatmul.f32.gmra.mxu0 %v276
      %v388 = vpop.f32.mrf.mxu0
      %v389 = vadd.f32 %v266, %v388
      %390 = vmatmul.f32.gmra.mxu0 %v279
      %v391 = vpop.f32.mrf.mxu0
      %v392 = vadd.f32 %v266, %v391
      %393 = vmatmul.f32.gmra.mxu0 %v282
      %v394 = vpop.f32.mrf.mxu0
      %v395 = vadd.f32 %v266, %v394
      %396 = vmatmul.f32.gmra.mxu0 %v285
      %v397 = vpop.f32.mrf.mxu0
      %v398 = vadd.f32 %v266, %v397
      %399 = vmatmul.f32.gmra.mxu0 %v288
      %v400 = vpop.f32.mrf.mxu0
      %v401 = vadd.f32 %v266, %v400
      %402 = vmatmul.f32.gmra.mxu0 %v291
      %v403 = vpop.f32.mrf.mxu0
      %v404 = vadd.f32 %v266, %v403
      %405 = vmatmul.f32.gmra.mxu0 %v294
      %v406 = vpop.f32.mrf.mxu0
      %v407 = vadd.f32 %v266, %v406
      %408 = vmatmul.f32.gmra.mxu0 %v297
      %v409 = vpop.f32.mrf.mxu0
      %v410 = vadd.f32 %v266, %v409
      %411 = vmatmul.f32.gmra.mxu0 %v300
      %v412 = vpop.f32.mrf.mxu0
      %v413 = vadd.f32 %v266, %v412
      %414 = vmatmul.f32.gmra.mxu0 %v303
      %v415 = vpop.f32.mrf.mxu0
      %v416 = vadd.f32 %v266, %v415
      %417 = vmatmul.f32.gmra.mxu0 %v306
      %v418 = vpop.f32.mrf.mxu0
      %v419 = vadd.f32 %v266, %v418
      %420 = vmatmul.f32.gmra.mxu0 %v309
      %v421 = vpop.f32.mrf.mxu0
      %v422 = vadd.f32 %v266, %v421
      %423 = vmatmul.f32.gmra.mxu0 %v312
      %v424 = vpop.f32.mrf.mxu0
      %v425 = vadd.f32 %v266, %v424
      %426 = vmatmul.f32.gmra.mxu0 %v315
      %v427 = vpop.f32.mrf.mxu0
      %v428 = vadd.f32 %v266, %v427
      %429 = vmatmul.f32.gmra.mxu0 %v318
      %v430 = vpop.f32.mrf.mxu0
      %v431 = vadd.f32 %v266, %v430
      %432 = vmatmul.f32.gmra.mxu0 %v321
      %v433 = vpop.f32.mrf.mxu0
      %v434 = vadd.f32 %v266, %v433
      %435 = vmatmul.f32.gmra.mxu0 %v324
      %v436 = vpop.f32.mrf.mxu0
      %v437 = vadd.f32 %v266, %v436
      %438 = vmatmul.f32.gmra.mxu0 %v327
      %v439 = vpop.f32.mrf.mxu0
      %v440 = vadd.f32 %v266, %v439
      %441 = vmatmul.f32.gmra.mxu0 %v330
      %v442 = vpop.f32.mrf.mxu0
      %v443 = vadd.f32 %v266, %v442
      %444 = vmatmul.f32.gmra.mxu0 %v333
      %v445 = vpop.f32.mrf.mxu0
      %v446 = vadd.f32 %v266, %v445
      %447 = vmatmul.f32.gmra.mxu0 %v336
      %v448 = vpop.f32.mrf.mxu0
      %v449 = vadd.f32 %v266, %v448
      %450 = vmatmul.f32.gmra.mxu0 %v339
      %v451 = vpop.f32.mrf.mxu0
      %v452 = vadd.f32 %v266, %v451
      %453 = vmatmul.f32.gmra.mxu0 %v342
      %v454 = vpop.f32.mrf.mxu0
      %v455 = vadd.f32 %v266, %v454
      %456 = vmatmul.f32.gmra.mxu0 %v345
      %v457 = vpop.f32.mrf.mxu0
      %v458 = vadd.f32 %v266, %v457
      %459 = vmatmul.f32.gmra.mxu0 %v348
      %v460 = vpop.f32.mrf.mxu0
      %v461 = vadd.f32 %v266, %v460
      %462 = vmatmul.f32.gmra.mxu0 %v351
      %v463 = vpop.f32.mrf.mxu0
      %v464 = vadd.f32 %v266, %v463
      %465 = vmatmul.f32.gmra.mxu0 %v354
      %v466 = vpop.f32.mrf.mxu0
      %v467 = vadd.f32 %v266, %v466
      %468 = vmatmul.f32.gmra.mxu0 %v357
      %v469 = vpop.f32.mrf.mxu0
      %v470 = vadd.f32 %v266, %v469
      %471 = vmatmul.f32.gmra.mxu0 %v360
      %v472 = vpop.f32.mrf.mxu0
      %v473 = vadd.f32 %v266, %v472
      %474 = vmatmul.f32.gmra.mxu0 %v363
      %v475 = vpop.f32.mrf.mxu0
      %v476 = vadd.f32 %v266, %v475
      %477 = vdwg.mxu0
      %v478 = vmax.f32 %v383, 0.0
      %v479 = vmax.f32 %v386, 0.0
      %v480 = vmax.f32 %v389, 0.0
      %v481 = vmax.f32 %v392, 0.0
      %v482 = vmax.f32 %v395, 0.0
      %v483 = vmax.f32 %v398, 0.0
      %v484 = vmax.f32 %v401, 0.0
      %v485 = vmax.f32 %v404, 0.0
      %v486 = vmax.f32 %v407, 0.0
      %v487 = vmax.f32 %v410, 0.0
      %v488 = vmax.f32 %v413, 0.0
      %v489 = vmax.f32 %v416, 0.0
      %v490 = vmax.f32 %v419, 0.0
      %v491 = vmax.f32 %v422, 0.0
      %v492 = vmax.f32 %v425, 0.0
      %v493 = vmax.f32 %v428, 0.0
      %v494 = vmax.f32 %v431, 0.0
      %v495 = vmax.f32 %v434, 0.0
      %v496 = vmax.f32 %v437, 0.0
      %v497 = vmax.f32 %v440, 0.0
      %v498 = vmax.f32 %v443, 0.0
      %v499 = vmax.f32 %v446, 0.0
      %v500 = vmax.f32 %v449, 0.0
      %v501 = vmax.f32 %v452, 0.0
      %v502 = vmax.f32 %v455, 0.0
      %v503 = vmax.f32 %v458, 0.0
      %v504 = vmax.f32 %v461, 0.0
      %v505 = vmax.f32 %v464, 0.0
      %v506 = vmax.f32 %v467, 0.0
      %v507 = vmax.f32 %v470, 0.0
      %v508 = vmax.f32 %v473, 0.0
      %v509 = vmax.f32 %v476, 0.0
      %v510 = vld [vmem:[%s3] sm:$0xff]
      %v511 = vld [vmem:[%s3 + $0x8] sm:$0xff]
      %v512 = vld [vmem:[%s3 + $0x10] sm:$0xff]
      %v513 = vld [vmem:[%s3 + $0x18] sm:$0xff]
      %v514 = vld [vmem:[%s3 + $0x20] sm:$0xff]
      %v515 = vld [vmem:[%s3 + $0x28] sm:$0xff]
      %v516 = vld [vmem:[%s3 + $0x30] sm:$0xff]
      %v517 = vld [vmem:[%s3 + $0x38] sm:$0xff]
      %v518 = vld [vmem:[%s4] sm:$0x1]
      %v520 = vperm.slane %v518, 0
      %vm522 = vcmask 523264
      %v524 = vsel %vm522, %v478, 0
      %v527 = vsel %vm522, %v479, 0
      %v530 = vsel %vm522, %v480, 0
      %v533 = vsel %vm522, %v481, 0
      %v536 = vsel %vm522, %v482, 0
      %v539 = vsel %vm522, %v483, 0
      %v542 = vsel %vm522, %v484, 0
      %v545 = vsel %vm522, %v485, 0
      %v548 = vsel %vm522, %v486, 0
      %v551 = vsel %vm522, %v487, 0
      %v554 = vsel %vm522, %v488, 0
      %v557 = vsel %vm522, %v489, 0
      %v560 = vsel %vm522, %v490, 0
      %v563 = vsel %vm522, %v491, 0
      %v566 = vsel %vm522, %v492, 0
      %v569 = vsel %vm522, %v493, 0
      %v572 = vsel %vm522, %v494, 0
      %v575 = vsel %vm522, %v495, 0
      %v578 = vsel %vm522, %v496, 0
      %v581 = vsel %vm522, %v497, 0
      %v584 = vsel %vm522, %v498, 0
      %v587 = vsel %vm522, %v499, 0
      %v590 = vsel %vm522, %v500, 0
      %v593 = vsel %vm522, %v501, 0
      %v596 = vsel %vm522, %v502, 0
      %v599 = vsel %vm522, %v503, 0
      %v602 = vsel %vm522, %v504, 0
      %v605 = vsel %vm522, %v505, 0
      %v608 = vsel %vm522, %v506, 0
      %v611 = vsel %vm522, %v507, 0
      %v614 = vsel %vm522, %v508, 0
      %v617 = vsel %vm522, %v509, 0
      %619 = vmatpush.msra.mxu0 0.0
      %620 = vmatpush.msra.mxu0 0.0
      %621 = vmatpush.msra.mxu0 0.0
      %622 = vmatpush.msra.mxu0 0.0
      %623 = vmatpush.msra.mxu0 0.0
      %624 = vmatpush.msra.mxu0 0.0
      %625 = vmatpush.msra.mxu0 0.0
      %626 = vmatpush.msra.mxu0 0.0
      %627 = vmatpush.msra.mxu0 %v517
      %628 = vmatpush.msra.mxu0 %v516
      %629 = vmatpush.msra.mxu0 %v515
      %630 = vmatpush.msra.mxu0 %v514
      %631 = vmatpush.msra.mxu0 %v513
      %632 = vmatpush.msra.mxu0 %v512
      %633 = vmatpush.msra.mxu0 %v511
      %634 = vmatpush.msra.mxu0 %v510
      %635 = vmatmul.f32.gmra.mxu0 %v524
      %v636 = vpop.f32.mrf.mxu0
      %v637 = vadd.f32 %v520, %v636
      %638 = vmatmul.f32.gmra.mxu0 %v527
      %v639 = vpop.f32.mrf.mxu0
      %v640 = vadd.f32 %v520, %v639
      %641 = vmatmul.f32.gmra.mxu0 %v530
      %v642 = vpop.f32.mrf.mxu0
      %v643 = vadd.f32 %v520, %v642
      %644 = vmatmul.f32.gmra.mxu0 %v533
      %v645 = vpop.f32.mrf.mxu0
      %v646 = vadd.f32 %v520, %v645
      %647 = vmatmul.f32.gmra.mxu0 %v536
      %v648 = vpop.f32.mrf.mxu0
      %v649 = vadd.f32 %v520, %v648
      %650 = vmatmul.f32.gmra.mxu0 %v539
      %v651 = vpop.f32.mrf.mxu0
      %v652 = vadd.f32 %v520, %v651
      %653 = vmatmul.f32.gmra.mxu0 %v542
      %v654 = vpop.f32.mrf.mxu0
      %v655 = vadd.f32 %v520, %v654
      %656 = vmatmul.f32.gmra.mxu0 %v545
      %v657 = vpop.f32.mrf.mxu0
      %v658 = vadd.f32 %v520, %v657
      %659 = vmatmul.f32.gmra.mxu0 %v548
      %v660 = vpop.f32.mrf.mxu0
      %v661 = vadd.f32 %v520, %v660
      %662 = vmatmul.f32.gmra.mxu0 %v551
      %v663 = vpop.f32.mrf.mxu0
      %v664 = vadd.f32 %v520, %v663
      %665 = vmatmul.f32.gmra.mxu0 %v554
      %v666 = vpop.f32.mrf.mxu0
      %v667 = vadd.f32 %v520, %v666
      %668 = vmatmul.f32.gmra.mxu0 %v557
      %v669 = vpop.f32.mrf.mxu0
      %v670 = vadd.f32 %v520, %v669
      %671 = vmatmul.f32.gmra.mxu0 %v560
      %v672 = vpop.f32.mrf.mxu0
      %v673 = vadd.f32 %v520, %v672
      %674 = vmatmul.f32.gmra.mxu0 %v563
      %v675 = vpop.f32.mrf.mxu0
      %v676 = vadd.f32 %v520, %v675
      %677 = vmatmul.f32.gmra.mxu0 %v566
      %v678 = vpop.f32.mrf.mxu0
      %v679 = vadd.f32 %v520, %v678
      %680 = vmatmul.f32.gmra.mxu0 %v569
      %v681 = vpop.f32.mrf.mxu0
      %v682 = vadd.f32 %v520, %v681
      %683 = vmatmul.f32.gmra.mxu0 %v572
      %v684 = vpop.f32.mrf.mxu0
      %v685 = vadd.f32 %v520, %v684
      %686 = vmatmul.f32.gmra.mxu0 %v575
      %v687 = vpop.f32.mrf.mxu0
      %v688 = vadd.f32 %v520, %v687
      %689 = vmatmul.f32.gmra.mxu0 %v578
      %v690 = vpop.f32.mrf.mxu0
      %v691 = vadd.f32 %v520, %v690
      %692 = vmatmul.f32.gmra.mxu0 %v581
      %v693 = vpop.f32.mrf.mxu0
      %v694 = vadd.f32 %v520, %v693
      %695 = vmatmul.f32.gmra.mxu0 %v584
      %v696 = vpop.f32.mrf.mxu0
      %v697 = vadd.f32 %v520, %v696
      %698 = vmatmul.f32.gmra.mxu0 %v587
      %v699 = vpop.f32.mrf.mxu0
      %v700 = vadd.f32 %v520, %v699
      %701 = vmatmul.f32.gmra.mxu0 %v590
      %v702 = vpop.f32.mrf.mxu0
      %v703 = vadd.f32 %v520, %v702
      %704 = vmatmul.f32.gmra.mxu0 %v593
      %v705 = vpop.f32.mrf.mxu0
      %v706 = vadd.f32 %v520, %v705
      %707 = vmatmul.f32.gmra.mxu0 %v596
      %v708 = vpop.f32.mrf.mxu0
      %v709 = vadd.f32 %v520, %v708
      %710 = vmatmul.f32.gmra.mxu0 %v599
      %v711 = vpop.f32.mrf.mxu0
      %v712 = vadd.f32 %v520, %v711
      %713 = vmatmul.f32.gmra.mxu0 %v602
      %v714 = vpop.f32.mrf.mxu0
      %v715 = vadd.f32 %v520, %v714
      %716 = vmatmul.f32.gmra.mxu0 %v605
      %v717 = vpop.f32.mrf.mxu0
      %v718 = vadd.f32 %v520, %v717
      %719 = vmatmul.f32.gmra.mxu0 %v608
      %v720 = vpop.f32.mrf.mxu0
      %v721 = vadd.f32 %v520, %v720
      %722 = vmatmul.f32.gmra.mxu0 %v611
      %v723 = vpop.f32.mrf.mxu0
      %v724 = vadd.f32 %v520, %v723
      %725 = vmatmul.f32.gmra.mxu0 %v614
      %v726 = vpop.f32.mrf.mxu0
      %v727 = vadd.f32 %v520, %v726
      %728 = vmatmul.f32.gmra.mxu0 %v617
      %v729 = vpop.f32.mrf.mxu0
      %v730 = vadd.f32 %v520, %v729
      %731 = vdwg.mxu0
      %732 = vst.msk [vmem:[%s226] sm:$0xff] %vm522, %v637
      %733 = vst.msk [vmem:[%s226 + $0x8] sm:$0xff] %vm522, %v640
      %734 = vst.msk [vmem:[%s226 + $0x10] sm:$0xff] %vm522, %v643
      %735 = vst.msk [vmem:[%s226 + $0x18] sm:$0xff] %vm522, %v646
      %736 = vst.msk [vmem:[%s226 + $0x20] sm:$0xff] %vm522, %v649
      %737 = vst.msk [vmem:[%s226 + $0x28] sm:$0xff] %vm522, %v652
      %738 = vst.msk [vmem:[%s226 + $0x30] sm:$0xff] %vm522, %v655
      %739 = vst.msk [vmem:[%s226 + $0x38] sm:$0xff] %vm522, %v658
      %740 = vst.msk [vmem:[%s226 + $0x40] sm:$0xff] %vm522, %v661
      %741 = vst.msk [vmem:[%s226 + $0x48] sm:$0xff] %vm522, %v664
      %742 = vst.msk [vmem:[%s226 + $0x50] sm:$0xff] %vm522, %v667
      %743 = vst.msk [vmem:[%s226 + $0x58] sm:$0xff] %vm522, %v670
      %744 = vst.msk [vmem:[%s226 + $0x60] sm:$0xff] %vm522, %v673
      %745 = vst.msk [vmem:[%s226 + $0x68] sm:$0xff] %vm522, %v676
      %746 = vst.msk [vmem:[%s226 + $0x70] sm:$0xff] %vm522, %v679
      %747 = vst.msk [vmem:[%s226 + $0x78] sm:$0xff] %vm522, %v682
      %748 = vst.msk [vmem:[%s226 + $0x80] sm:$0xff] %vm522, %v685
      %749 = vst.msk [vmem:[%s226 + $0x88] sm:$0xff] %vm522, %v688
      %750 = vst.msk [vmem:[%s226 + $0x90] sm:$0xff] %vm522, %v691
      %751 = vst.msk [vmem:[%s226 + $0x98] sm:$0xff] %vm522, %v694
      %752 = vst.msk [vmem:[%s226 + $0xa0] sm:$0xff] %vm522, %v697
      %753 = vst.msk [vmem:[%s226 + $0xa8] sm:$0xff] %vm522, %v700
      %754 = vst.msk [vmem:[%s226 + $0xb0] sm:$0xff] %vm522, %v703
      %755 = vst.msk [vmem:[%s226 + $0xb8] sm:$0xff] %vm522, %v706
      %756 = vst.msk [vmem:[%s226 + $0xc0] sm:$0xff] %vm522, %v709
      %757 = vst.msk [vmem:[%s226 + $0xc8] sm:$0xff] %vm522, %v712
      %758 = vst.msk [vmem:[%s226 + $0xd0] sm:$0xff] %vm522, %v715
      %759 = vst.msk [vmem:[%s226 + $0xd8] sm:$0xff] %vm522, %v718
      %760 = vst.msk [vmem:[%s226 + $0xe0] sm:$0xff] %vm522, %v721
      %761 = vst.msk [vmem:[%s226 + $0xe8] sm:$0xff] %vm522, %v724
      %762 = vst.msk [vmem:[%s226 + $0xf0] sm:$0xff] %vm522, %v727
      %763 = vst.msk [vmem:[%s226 + $0xf8] sm:$0xff] %vm522, %v730
      %s764 = smul.u32 32, %s16
      %p765 = scmp.lt.s32.totalorder %s764, 63
      %s766 = scalar_select %p765, %s764, 63
      %s767 = smul.addr %s766, 8
      %s768 = scalar_lea.vmem %s5, %s767
      // Predicated region
      $region41: #{tpu_custom_call.1} parent=39 // pred_check
        %p769 = pneg %p144
      $region42: #{tpu_custom_call.1} parent=39 // pred_check_branch
        %771 = sbr.rel (%p769) target = $region44
      $region43: #{tpu_custom_call.1} parent=39 // pred_region
        %s772 = smul.u32 32, %s16
      $region44: #{tpu_custom_call.1} parent=39 // pred_fallthru
        _
    $region40: #{tpu_custom_call.1} parent=5 // pred_fallthru
      _
    %p773 = scmp.le.s32.totalorder 2, %s11
    // Predicated region
    $region45: #{tpu_custom_call.1} parent=5 // pred_check
      %p774 = pneg %p773
    $region46: #{tpu_custom_call.1} parent=5 // pred_check_branch
      %776 = sbr.rel (%p774) target = $region48
    $region47: #{tpu_custom_call.1} parent=5 // pred_region
      %s777 = ssub.s32 %s11, 2
      // Predicated region
      $region49: #{tpu_custom_call.1} parent=47 // pred_check
        %p778 = pneg %p150
      $region50: #{tpu_custom_call.1} parent=47 // pred_check_branch
        %780 = sbr.rel (%p778) target = $region52
      $region51: #{tpu_custom_call.1} parent=47 // pred_region
        %s781 = smul.u32 32, %s17
        %p782 = scmp.lt.s32.totalorder %s781, 63
        %s783 = scalar_select %p782, %s781, 63
        %s784 = smul.addr %s783, 8
        %s785 = scalar_lea.vmem %s5, %s784
      $region52: #{tpu_custom_call.1} parent=47 // pred_fallthru
        _
    $region48: #{tpu_custom_call.1} parent=5 // pred_fallthru
      _
  $region6: #{tpu_custom_call.1} parent=0 // loop_footer
    %s15 = sadd.s32 1, %s11
  $region7: #{tpu_custom_call.1} parent=0 // loop_footer_branch
    %10 = sbr.rel target = $region3
  $region8: #{tpu_custom_call.1} parent=0 // loop_exit
    _

</llo_original>
